<compile_context>
chip_gen: v7x
topology: tpu7x:2x2x1
jax: 0.10.0
libtpu: 0.0.40
codegen_flags: <defaults>
</compile_context>

<pallas_src>
import functools

import jax
import jax.numpy as jnp
from jax import lax
from jax.experimental import pallas as pl
from jax.experimental.pallas import tpu as pltpu

_LANE = 128  # lane-dense output padding


def _xavier_uniform(key, fan_in, fan_out, dtype=jnp.float32):
    # matches nn.init.xavier_uniform_ (gain=1): U(-a, a), a = sqrt(6/(fan_in+fan_out))
    limit = (6.0 / (fan_in + fan_out)) ** 0.5
    # stored (fan_in, fan_out) so the kernel does x @ W
    return jax.random.uniform(key, (fan_in, fan_out), dtype, -limit, limit)


def _mlp_attn_kernel(x_ref,
                     wq_ref, bq_ref, wk_ref, bk_ref, wv_ref, bv_ref,
                     w1x_ref, w1a_ref, b1_ref,
                     w2_ref, b2_ref, w3_ref, b3_ref,
                     w4_ref, b4_ref, w5_ref, b5_ref, w6_ref, b6_ref,
                     out_ref, *, attention_size):
    # Activations in f32, matmul operands cast to bf16, f32 accumulation on the MXU.
    x = x_ref[...].astype(jnp.float32)                          # (N, D)
    x_bf = x.astype(jnp.bfloat16)

    # ---------------- AttentionModule (attention over the batch axis) -------
    q = jnp.dot(x_bf, wq_ref[...], preferred_element_type=jnp.float32) + bq_ref[...]
    k = jnp.dot(x_bf, wk_ref[...], preferred_element_type=jnp.float32) + bk_ref[...]
    v = jnp.dot(x_bf, wv_ref[...], preferred_element_type=jnp.float32) + bv_ref[...]

    inv_scale = 1.0 / float(attention_size) ** 0.5              # compile-time constant
    # Q @ K^T without materializing a transpose: contract lane axis vs lane axis.
    scores = lax.dot_general(
        q.astype(jnp.bfloat16), k.astype(jnp.bfloat16),
        dimension_numbers=(((1,), (1,)), ((), ())),
        preferred_element_type=jnp.float32) * inv_scale          # (N, N)
    scores = scores - jnp.max(scores, axis=-1, keepdims=True)    # stable softmax
    e = jnp.exp(scores)
    denom = jnp.sum(e, axis=-1, keepdims=True)
    attn_w = e * pl.reciprocal(denom, approx=True)               # EUP reciprocal
    att = jnp.dot(attn_w.astype(jnp.bfloat16), v.astype(jnp.bfloat16),
                  preferred_element_type=jnp.float32)            # (N, D)

    # ---------------- fc1 on cat((x, att), dim=1) ---------------------------
    # torch.cat((x, att), 1) @ W1 == x @ W1_x + att @ W1_att  (weights pre-split)
    h = (jnp.dot(x_bf, w1x_ref[...], preferred_element_type=jnp.float32)
         + jnp.dot(att.astype(jnp.bfloat16), w1a_ref[...],
                   preferred_element_type=jnp.float32)
         + b1_ref[...])
    h = jnp.maximum(h, 0.0)

    def lin_relu(h, w_ref, b_ref):
        y = jnp.dot(h.astype(jnp.bfloat16), w_ref[...],
                    preferred_element_type=jnp.float32) + b_ref[...]
        return jnp.maximum(y, 0.0)

    h = lin_relu(h, w2_ref, b2_ref)
    # dropout1 (p=0.2): identity at inference
    h = lin_relu(h, w3_ref, b3_ref)
    h = lin_relu(h, w4_ref, b4_ref)
    # dropout2 (p=0.1): identity at inference
    h = lin_relu(h, w5_ref, b5_ref)
    # fc6 weight/bias are zero-padded to 128 lanes -> lane-dense unmasked store.
    h = lin_relu(h, w6_ref, b6_ref)                              # (N, 128)

    out_ref[...] = h.astype(out_ref.dtype)


def init_params(key, input_dim, hidden_dim1, hidden_dim2, output_dim):
    ks = jax.random.split(key, 9)
    p = {}
    # attention: Linear(input_dim -> input_dim) x3, zero bias (xavier for determinism,
    # matching the top-level init loop applied uniformly).
    p["wq"] = _xavier_uniform(ks[0], input_dim, input_dim).astype(jnp.bfloat16)
    p["wk"] = _xavier_uniform(ks[1], input_dim, input_dim).astype(jnp.bfloat16)
    p["wv"] = _xavier_uniform(ks[2], input_dim, input_dim).astype(jnp.bfloat16)
    p["bq"] = jnp.zeros((1, input_dim), jnp.float32)
    p["bk"] = jnp.zeros((1, input_dim), jnp.float32)
    p["bv"] = jnp.zeros((1, input_dim), jnp.float32)
    # MLP. fc1 weight is xavier-initialized over the full (2D, H1) fan-in, then split
    # into the x-half and the attention-half so the kernel never slices a ref.
    w1_full = _xavier_uniform(ks[3], 2 * input_dim, hidden_dim1)
    p["w1x"] = w1_full[:input_dim, :].astype(jnp.bfloat16)
    p["w1a"] = w1_full[input_dim:, :].astype(jnp.bfloat16)
    p["w2"] = _xavier_uniform(ks[4], hidden_dim1, hidden_dim1).astype(jnp.bfloat16)
    p["w3"] = _xavier_uniform(ks[5], hidden_dim1, hidden_dim2).astype(jnp.bfloat16)
    p["w4"] = _xavier_uniform(ks[6], hidden_dim2, hidden_dim2).astype(jnp.bfloat16)
    p["w5"] = _xavier_uniform(ks[7], hidden_dim2, hidden_dim2).astype(jnp.bfloat16)
    # fc6 zero-padded on the output (lane) axis to 128 for unmasked stores.
    w6 = _xavier_uniform(ks[8], hidden_dim2, output_dim)
    p["w6"] = jnp.pad(w6, ((0, 0), (0, _LANE - output_dim))).astype(jnp.bfloat16)
    p["b1"] = jnp.zeros((1, hidden_dim1), jnp.float32)
    p["b2"] = jnp.zeros((1, hidden_dim1), jnp.float32)
    p["b3"] = jnp.zeros((1, hidden_dim2), jnp.float32)
    p["b4"] = jnp.zeros((1, hidden_dim2), jnp.float32)
    p["b5"] = jnp.zeros((1, hidden_dim2), jnp.float32)
    p["b6"] = jnp.zeros((1, _LANE), jnp.float32)
    return p


def mlp_regressor6_forward(x, params, *, input_dim, hidden_dim1, hidden_dim2,
                           output_dim):
    n = x.shape[0]
    flat_args = (
        x,
        params["wq"], params["bq"], params["wk"], params["bk"],
        params["wv"], params["bv"],
        params["w1x"], params["w1a"], params["b1"],
        params["w2"], params["b2"],
        params["w3"], params["b3"], params["w4"], params["b4"],
        params["w5"], params["b5"], params["w6"], params["b6"],
    )
    # Small problem size: whole arrays live in VMEM as single (full-extent) blocks.
    vmem_spec = pl.BlockSpec(memory_space=pltpu.MemorySpace.VMEM)
    kernel = functools.partial(_mlp_attn_kernel, attention_size=input_dim)

    d, h1, h2 = input_dim, hidden_dim1, hidden_dim2
    flops = 2 * n * (3 * d * d          # q/k/v projections
                     + 2 * n * d        # scores + attn@v
                     + 2 * d * h1       # fc1 (split)
                     + h1 * h1 + h1 * h2 + 2 * h2 * h2 + h2 * _LANE)
    bytes_accessed = sum(int(a.size) * a.dtype.itemsize for a in flat_args) \
        + n * _LANE * 4
    cost = pl.CostEstimate(flops=flops, transcendentals=n * n + n,
                           bytes_accessed=bytes_accessed)

    out_padded = pl.pallas_call(
        kernel,
        out_shape=jax.ShapeDtypeStruct((n, _LANE), jnp.float32),
        in_specs=[vmem_spec] * len(flat_args),
        out_specs=vmem_spec,
        cost_estimate=cost,
    )(*flat_args)
    # TODO(synk): if N or hidden dims are scaled up, add a row-tile grid over N
    # (parallel dimension_semantics) and flash-style attention tiling; at this size a
    # single fused gridless call is optimal.
    return out_padded[:, :output_dim]


if __name__ == "__main__":
    # Small shapes consistent with the module: batch=8 samples of input_dim=16.
    N, INPUT_DIM = 8, 16
    HIDDEN1, HIDDEN2, OUTPUT_DIM = 32, 32, 8

    key = jax.random.PRNGKey(0)
    kx, kp = jax.random.split(key)
    x = jax.random.normal(kx, (N, INPUT_DIM), jnp.float32)
    params = init_params(kp, INPUT_DIM, HIDDEN1, HIDDEN2, OUTPUT_DIM)

    out = mlp_regressor6_forward(x, params, input_dim=INPUT_DIM,
                                 hidden_dim1=HIDDEN1, hidden_dim2=HIDDEN2,
                                 output_dim=OUTPUT_DIM)
    out = jax.block_until_ready(out)
    assert out.shape == (N, OUTPUT_DIM)
    assert bool(jnp.all(jnp.isfinite(out)))
    print("KERNEL_OK")
</pallas_src>

<mosaic_0001>
module attributes {stable_mosaic.version = 11 : i64} {
  func.func @_mlp_attn_kernel(%arg0: memref<8x16xf32, #tpu.memory_space<vmem>>, %arg1: memref<16x16xbf16, #tpu.memory_space<vmem>>, %arg2: memref<1x16xf32, #tpu.memory_space<vmem>>, %arg3: memref<16x16xbf16, #tpu.memory_space<vmem>>, %arg4: memref<1x16xf32, #tpu.memory_space<vmem>>, %arg5: memref<16x16xbf16, #tpu.memory_space<vmem>>, %arg6: memref<1x16xf32, #tpu.memory_space<vmem>>, %arg7: memref<16x32xbf16, #tpu.memory_space<vmem>>, %arg8: memref<16x32xbf16, #tpu.memory_space<vmem>>, %arg9: memref<1x32xf32, #tpu.memory_space<vmem>>, %arg10: memref<32x32xbf16, #tpu.memory_space<vmem>>, %arg11: memref<1x32xf32, #tpu.memory_space<vmem>>, %arg12: memref<32x32xbf16, #tpu.memory_space<vmem>>, %arg13: memref<1x32xf32, #tpu.memory_space<vmem>>, %arg14: memref<32x32xbf16, #tpu.memory_space<vmem>>, %arg15: memref<1x32xf32, #tpu.memory_space<vmem>>, %arg16: memref<32x32xbf16, #tpu.memory_space<vmem>>, %arg17: memref<1x32xf32, #tpu.memory_space<vmem>>, %arg18: memref<32x128xbf16, #tpu.memory_space<vmem>>, %arg19: memref<1x128xf32, #tpu.memory_space<vmem>>, %arg20: memref<8x128xf32, #tpu.memory_space<vmem>>) attributes {dimension_semantics = [], scalar_prefetch = 0 : i64, scratch_operands = 0 : i64, tpu.core_type = #tpu.core_type<tc>} {
    %c0 = arith.constant 0 : index
    %c0_0 = arith.constant 0 : index
    %0 = vector.load %arg0[%c0, %c0_0] : memref<8x16xf32, #tpu.memory_space<vmem>>, vector<8x16xf32>
    %1 = arith.truncf %0 : vector<8x16xf32> to vector<8x16xbf16>
    %c0_1 = arith.constant 0 : index
    %c0_2 = arith.constant 0 : index
    %2 = vector.load %arg1[%c0_1, %c0_2] : memref<16x16xbf16, #tpu.memory_space<vmem>>, vector<16x16xbf16>
    %cst = arith.constant dense<0.000000e+00> : vector<8x16xf32>
    %3 = tpu.matmul %1, %2, %cst {dimension_numbers = #tpu.dot_dimension_numbers<[1], [0], [0], [1], [0, 0, 1, 1], [], []>} : vector<8x16xbf16>, vector<16x16xbf16>, vector<8x16xf32> -> vector<8x16xf32>
    %c0_3 = arith.constant 0 : index
    %c0_4 = arith.constant 0 : index
    %4 = vector.load %arg2[%c0_3, %c0_4] : memref<1x16xf32, #tpu.memory_space<vmem>>, vector<1x16xf32>
    %5 = vector.broadcast %4 : vector<1x16xf32> to vector<8x16xf32>
    %6 = arith.addf %3, %5 : vector<8x16xf32>
    %c0_5 = arith.constant 0 : index
    %c0_6 = arith.constant 0 : index
    %7 = vector.load %arg3[%c0_5, %c0_6] : memref<16x16xbf16, #tpu.memory_space<vmem>>, vector<16x16xbf16>
    %cst_7 = arith.constant dense<0.000000e+00> : vector<8x16xf32>
    %8 = tpu.matmul %1, %7, %cst_7 {dimension_numbers = #tpu.dot_dimension_numbers<[1], [0], [0], [1], [0, 0, 1, 1], [], []>} : vector<8x16xbf16>, vector<16x16xbf16>, vector<8x16xf32> -> vector<8x16xf32>
    %c0_8 = arith.constant 0 : index
    %c0_9 = arith.constant 0 : index
    %9 = vector.load %arg4[%c0_8, %c0_9] : memref<1x16xf32, #tpu.memory_space<vmem>>, vector<1x16xf32>
    %10 = vector.broadcast %9 : vector<1x16xf32> to vector<8x16xf32>
    %11 = arith.addf %8, %10 : vector<8x16xf32>
    %c0_10 = arith.constant 0 : index
    %c0_11 = arith.constant 0 : index
    %12 = vector.load %arg5[%c0_10, %c0_11] : memref<16x16xbf16, #tpu.memory_space<vmem>>, vector<16x16xbf16>
    %cst_12 = arith.constant dense<0.000000e+00> : vector<8x16xf32>
    %13 = tpu.matmul %1, %12, %cst_12 {dimension_numbers = #tpu.dot_dimension_numbers<[1], [0], [0], [1], [0, 0, 1, 1], [], []>} : vector<8x16xbf16>, vector<16x16xbf16>, vector<8x16xf32> -> vector<8x16xf32>
    %c0_13 = arith.constant 0 : index
    %c0_14 = arith.constant 0 : index
    %14 = vector.load %arg6[%c0_13, %c0_14] : memref<1x16xf32, #tpu.memory_space<vmem>>, vector<1x16xf32>
    %15 = vector.broadcast %14 : vector<1x16xf32> to vector<8x16xf32>
    %16 = arith.addf %13, %15 : vector<8x16xf32>
    %17 = arith.truncf %6 : vector<8x16xf32> to vector<8x16xbf16>
    %18 = arith.truncf %11 : vector<8x16xf32> to vector<8x16xbf16>
    %cst_15 = arith.constant dense<0.000000e+00> : vector<8x8xf32>
    %19 = tpu.matmul %17, %18, %cst_15 {dimension_numbers = #tpu.dot_dimension_numbers<[1], [1], [0], [0], [0, 0, 1, 0], [], []>} : vector<8x16xbf16>, vector<8x16xbf16>, vector<8x8xf32> -> vector<8x8xf32>
    %cst_16 = arith.constant 2.500000e-01 : f32
    %20 = vector.broadcast %cst_16 : f32 to vector<8x8xf32>
    %21 = arith.mulf %19, %20 : vector<8x8xf32>
    %cst_17 = arith.constant dense<0xFF800000> : vector<8xf32>
    %22 = vector.multi_reduction <maximumf>, %21, %cst_17 [1] : vector<8x8xf32> to vector<8xf32>
    %23 = vector.shape_cast %22 : vector<8xf32> to vector<8x1xf32>
    %24 = vector.broadcast %23 : vector<8x1xf32> to vector<8x8xf32>
    %25 = arith.subf %21, %24 : vector<8x8xf32>
    %26 = math.exp %25 : vector<8x8xf32>
    %cst_18 = arith.constant dense<0.000000e+00> : vector<8xf32>
    %27 = vector.multi_reduction <add>, %26, %cst_18 [1] : vector<8x8xf32> to vector<8xf32>
    %28 = vector.shape_cast %27 : vector<8xf32> to vector<8x1xf32>
    %29 = tpu.reciprocal %28 {approx = true} : vector<8x1xf32> -> vector<8x1xf32>
    %30 = vector.broadcast %29 : vector<8x1xf32> to vector<8x8xf32>
    %31 = arith.mulf %26, %30 : vector<8x8xf32>
    %32 = arith.truncf %31 : vector<8x8xf32> to vector<8x8xbf16>
    %33 = arith.truncf %16 : vector<8x16xf32> to vector<8x16xbf16>
    %cst_19 = arith.constant dense<0.000000e+00> : vector<8x16xf32>
    %34 = tpu.matmul %32, %33, %cst_19 {dimension_numbers = #tpu.dot_dimension_numbers<[1], [0], [0], [1], [0, 0, 1, 1], [], []>} : vector<8x8xbf16>, vector<8x16xbf16>, vector<8x16xf32> -> vector<8x16xf32>
    %c0_20 = arith.constant 0 : index
    %c0_21 = arith.constant 0 : index
    %35 = vector.load %arg7[%c0_20, %c0_21] : memref<16x32xbf16, #tpu.memory_space<vmem>>, vector<16x32xbf16>
    %cst_22 = arith.constant dense<0.000000e+00> : vector<8x32xf32>
    %36 = tpu.matmul %1, %35, %cst_22 {dimension_numbers = #tpu.dot_dimension_numbers<[1], [0], [0], [1], [0, 0, 1, 1], [], []>} : vector<8x16xbf16>, vector<16x32xbf16>, vector<8x32xf32> -> vector<8x32xf32>
    %37 = arith.truncf %34 : vector<8x16xf32> to vector<8x16xbf16>
    %c0_23 = arith.constant 0 : index
    %c0_24 = arith.constant 0 : index
    %38 = vector.load %arg8[%c0_23, %c0_24] : memref<16x32xbf16, #tpu.memory_space<vmem>>, vector<16x32xbf16>
    %cst_25 = arith.constant dense<0.000000e+00> : vector<8x32xf32>
    %39 = tpu.matmul %37, %38, %cst_25 {dimension_numbers = #tpu.dot_dimension_numbers<[1], [0], [0], [1], [0, 0, 1, 1], [], []>} : vector<8x16xbf16>, vector<16x32xbf16>, vector<8x32xf32> -> vector<8x32xf32>
    %40 = arith.addf %36, %39 : vector<8x32xf32>
    %c0_26 = arith.constant 0 : index
    %c0_27 = arith.constant 0 : index
    %41 = vector.load %arg9[%c0_26, %c0_27] : memref<1x32xf32, #tpu.memory_space<vmem>>, vector<1x32xf32>
    %42 = vector.broadcast %41 : vector<1x32xf32> to vector<8x32xf32>
    %43 = arith.addf %40, %42 : vector<8x32xf32>
    %cst_28 = arith.constant 0.000000e+00 : f32
    %44 = vector.broadcast %cst_28 : f32 to vector<8x32xf32>
    %45 = arith.maximumf %43, %44 : vector<8x32xf32>
    %46 = arith.truncf %45 : vector<8x32xf32> to vector<8x32xbf16>
    %c0_29 = arith.constant 0 : index
    %c0_30 = arith.constant 0 : index
    %47 = vector.load %arg10[%c0_29, %c0_30] : memref<32x32xbf16, #tpu.memory_space<vmem>>, vector<32x32xbf16>
    %cst_31 = arith.constant dense<0.000000e+00> : vector<8x32xf32>
    %48 = tpu.matmul %46, %47, %cst_31 {dimension_numbers = #tpu.dot_dimension_numbers<[1], [0], [0], [1], [0, 0, 1, 1], [], []>} : vector<8x32xbf16>, vector<32x32xbf16>, vector<8x32xf32> -> vector<8x32xf32>
    %c0_32 = arith.constant 0 : index
    %c0_33 = arith.constant 0 : index
    %49 = vector.load %arg11[%c0_32, %c0_33] : memref<1x32xf32, #tpu.memory_space<vmem>>, vector<1x32xf32>
    %50 = vector.broadcast %49 : vector<1x32xf32> to vector<8x32xf32>
    %51 = arith.addf %48, %50 : vector<8x32xf32>
    %cst_34 = arith.constant 0.000000e+00 : f32
    %52 = vector.broadcast %cst_34 : f32 to vector<8x32xf32>
    %53 = arith.maximumf %51, %52 : vector<8x32xf32>
    %54 = arith.truncf %53 : vector<8x32xf32> to vector<8x32xbf16>
    %c0_35 = arith.constant 0 : index
    %c0_36 = arith.constant 0 : index
    %55 = vector.load %arg12[%c0_35, %c0_36] : memref<32x32xbf16, #tpu.memory_space<vmem>>, vector<32x32xbf16>
    %cst_37 = arith.constant dense<0.000000e+00> : vector<8x32xf32>
    %56 = tpu.matmul %54, %55, %cst_37 {dimension_numbers = #tpu.dot_dimension_numbers<[1], [0], [0], [1], [0, 0, 1, 1], [], []>} : vector<8x32xbf16>, vector<32x32xbf16>, vector<8x32xf32> -> vector<8x32xf32>
    %c0_38 = arith.constant 0 : index
    %c0_39 = arith.constant 0 : index
    %57 = vector.load %arg13[%c0_38, %c0_39] : memref<1x32xf32, #tpu.memory_space<vmem>>, vector<1x32xf32>
    %58 = vector.broadcast %57 : vector<1x32xf32> to vector<8x32xf32>
    %59 = arith.addf %56, %58 : vector<8x32xf32>
    %cst_40 = arith.constant 0.000000e+00 : f32
    %60 = vector.broadcast %cst_40 : f32 to vector<8x32xf32>
    %61 = arith.maximumf %59, %60 : vector<8x32xf32>
    %62 = arith.truncf %61 : vector<8x32xf32> to vector<8x32xbf16>
    %c0_41 = arith.constant 0 : index
    %c0_42 = arith.constant 0 : index
    %63 = vector.load %arg14[%c0_41, %c0_42] : memref<32x32xbf16, #tpu.memory_space<vmem>>, vector<32x32xbf16>
    %cst_43 = arith.constant dense<0.000000e+00> : vector<8x32xf32>
    %64 = tpu.matmul %62, %63, %cst_43 {dimension_numbers = #tpu.dot_dimension_numbers<[1], [0], [0], [1], [0, 0, 1, 1], [], []>} : vector<8x32xbf16>, vector<32x32xbf16>, vector<8x32xf32> -> vector<8x32xf32>
    %c0_44 = arith.constant 0 : index
    %c0_45 = arith.constant 0 : index
    %65 = vector.load %arg15[%c0_44, %c0_45] : memref<1x32xf32, #tpu.memory_space<vmem>>, vector<1x32xf32>
    %66 = vector.broadcast %65 : vector<1x32xf32> to vector<8x32xf32>
    %67 = arith.addf %64, %66 : vector<8x32xf32>
    %cst_46 = arith.constant 0.000000e+00 : f32
    %68 = vector.broadcast %cst_46 : f32 to vector<8x32xf32>
    %69 = arith.maximumf %67, %68 : vector<8x32xf32>
    %70 = arith.truncf %69 : vector<8x32xf32> to vector<8x32xbf16>
    %c0_47 = arith.constant 0 : index
    %c0_48 = arith.constant 0 : index
    %71 = vector.load %arg16[%c0_47, %c0_48] : memref<32x32xbf16, #tpu.memory_space<vmem>>, vector<32x32xbf16>
    %cst_49 = arith.constant dense<0.000000e+00> : vector<8x32xf32>
    %72 = tpu.matmul %70, %71, %cst_49 {dimension_numbers = #tpu.dot_dimension_numbers<[1], [0], [0], [1], [0, 0, 1, 1], [], []>} : vector<8x32xbf16>, vector<32x32xbf16>, vector<8x32xf32> -> vector<8x32xf32>
    %c0_50 = arith.constant 0 : index
    %c0_51 = arith.constant 0 : index
    %73 = vector.load %arg17[%c0_50, %c0_51] : memref<1x32xf32, #tpu.memory_space<vmem>>, vector<1x32xf32>
    %74 = vector.broadcast %73 : vector<1x32xf32> to vector<8x32xf32>
    %75 = arith.addf %72, %74 : vector<8x32xf32>
    %cst_52 = arith.constant 0.000000e+00 : f32
    %76 = vector.broadcast %cst_52 : f32 to vector<8x32xf32>
    %77 = arith.maximumf %75, %76 : vector<8x32xf32>
    %78 = arith.truncf %77 : vector<8x32xf32> to vector<8x32xbf16>
    %c0_53 = arith.constant 0 : index
    %c0_54 = arith.constant 0 : index
    %79 = vector.load %arg18[%c0_53, %c0_54] : memref<32x128xbf16, #tpu.memory_space<vmem>>, vector<32x128xbf16>
    %cst_55 = arith.constant dense<0.000000e+00> : vector<8x128xf32>
    %80 = tpu.matmul %78, %79, %cst_55 {dimension_numbers = #tpu.dot_dimension_numbers<[1], [0], [0], [1], [0, 0, 1, 1], [], []>} : vector<8x32xbf16>, vector<32x128xbf16>, vector<8x128xf32> -> vector<8x128xf32>
    %c0_56 = arith.constant 0 : index
    %c0_57 = arith.constant 0 : index
    %81 = vector.load %arg19[%c0_56, %c0_57] : memref<1x128xf32, #tpu.memory_space<vmem>>, vector<1x128xf32>
    %82 = vector.broadcast %81 : vector<1x128xf32> to vector<8x128xf32>
    %83 = arith.addf %80, %82 : vector<8x128xf32>
    %cst_58 = arith.constant 0.000000e+00 : f32
    %84 = vector.broadcast %cst_58 : f32 to vector<8x128xf32>
    %85 = arith.maximumf %83, %84 : vector<8x128xf32>
    %c0_59 = arith.constant 0 : index
    %c0_60 = arith.constant 0 : index
    %86 = vector.load %arg20[%c0_59, %c0_60] : memref<8x128xf32, #tpu.memory_space<vmem>>, vector<8x128xf32>
    tpu.vector_store %arg20[%c0_59, %c0_60], %85 {strides = array<i32>} : memref<8x128xf32, #tpu.memory_space<vmem>>, vector<8x128xf32>,
    return
  }
}

</mosaic_0001>

<llo_original>
// kernel: tpu_custom_call.1
$region0: #{tpu_custom_call.1}
  #allocation0 [shape = 'u32[]', space=smem, size = 0x4, offset = 0x4, fixed_abs, tag = 'smem constant byte address 0x4 - core index']
  #allocation1 [shape = 'u32[144,128]{1,0:T(1,128)}', space=vmem, size = 0x12000, scoped, tag = 'internal scratch']
  %s0 = inlined_call_operand.hbm [shape: f32[8,16], index: 0, kind: input, shape index: {}]
  %s1 = inlined_call_operand.hbm [shape: bf16[16,16], index: 1, kind: input, shape index: {}]
  %s2 = inlined_call_operand.hbm [shape: f32[1,16], index: 2, kind: input, shape index: {}]
  %s3 = inlined_call_operand.hbm [shape: bf16[16,16], index: 3, kind: input, shape index: {}]
  %s4 = inlined_call_operand.hbm [shape: f32[1,16], index: 4, kind: input, shape index: {}]
  %s5 = inlined_call_operand.hbm [shape: bf16[16,16], index: 5, kind: input, shape index: {}]
  %s6 = inlined_call_operand.hbm [shape: f32[1,16], index: 6, kind: input, shape index: {}]
  %s7 = inlined_call_operand.hbm [shape: bf16[16,32], index: 7, kind: input, shape index: {}]
  %s8 = inlined_call_operand.hbm [shape: bf16[16,32], index: 8, kind: input, shape index: {}]
  %s9 = inlined_call_operand.hbm [shape: f32[1,32], index: 9, kind: input, shape index: {}]
  %s10 = inlined_call_operand.vmem [shape: bf16[32,32], index: 10, kind: input, shape index: {}]
  %s11 = inlined_call_operand.hbm [shape: f32[1,32], index: 11, kind: input, shape index: {}]
  %s12 = inlined_call_operand.vmem [shape: bf16[32,32], index: 12, kind: input, shape index: {}]
  %s13 = inlined_call_operand.hbm [shape: f32[1,32], index: 13, kind: input, shape index: {}]
  %s14 = inlined_call_operand.vmem [shape: bf16[32,32], index: 14, kind: input, shape index: {}]
  %s15 = inlined_call_operand.hbm [shape: f32[1,32], index: 15, kind: input, shape index: {}]
  %s16 = inlined_call_operand.hbm [shape: bf16[32,32], index: 16, kind: input, shape index: {}]
  %s17 = inlined_call_operand.hbm [shape: f32[1,32], index: 17, kind: input, shape index: {}]
  %s18 = inlined_call_operand.vmem [shape: bf16[32,128], index: 18, kind: input, shape index: {}]
  %s19 = inlined_call_operand.vmem [shape: f32[1,128], index: 19, kind: input, shape index: {}]
  %s20 = inlined_call_operand.hbm [shape: f32[8,128], index: 20, kind: output, shape index: {}]
  %s21 = sld [smem:[#allocation0]]
  $region150: #{tpu_custom_call.1} parent=0
    _
  %s23 = ssub.s32 1, %s21
  %s24 = scalar_select 0, %s23, %s21
  $region1: #{tpu_custom_call.1} parent=0
    #allocation2 [shape = 'u8[4096]{0}', space=vmem, size = 0x1000, scoped, tag = 'input window, operand 0, single buffered']
    #allocation3 [shape = 's32[1]{0}', space=sflag, size = 0x4, scoped, tag = 'scoped memory for tpu_custom_call.1']
    #allocation4 [shape = 's32[1]{0}', space=sflag, size = 0x4, scoped, tag = 'scoped memory for tpu_custom_call.1']
    #allocation5 [shape = 'u8[4096]{0}', space=vmem, size = 0x1000, scoped, tag = 'input window, operand 1, single buffered']
    #allocation6 [shape = 's32[1]{0}', space=sflag, size = 0x4, scoped, tag = 'scoped memory for tpu_custom_call.1']
    #allocation7 [shape = 'u8[512]{0}', space=vmem, size = 0x400, scoped, tag = 'input window, operand 2, single buffered']
    #allocation8 [shape = 'u8[4096]{0}', space=vmem, size = 0x1000, scoped, tag = 'input window, operand 3, single buffered']
    #allocation9 [shape = 's32[1]{0}', space=sflag, size = 0x4, scoped, tag = 'scoped memory for tpu_custom_call.1']
    #allocation10 [shape = 'u8[512]{0}', space=vmem, size = 0x400, scoped, tag = 'input window, operand 4, single buffered']
    #allocation11 [shape = 'u8[4096]{0}', space=vmem, size = 0x1000, scoped, tag = 'input window, operand 5, single buffered']
    #allocation12 [shape = 's32[1]{0}', space=sflag, size = 0x4, scoped, tag = 'scoped memory for tpu_custom_call.1']
    #allocation13 [shape = 'u8[512]{0}', space=vmem, size = 0x400, scoped, tag = 'input window, operand 6, single buffered']
    #allocation14 [shape = 'u8[4096]{0}', space=vmem, size = 0x1000, scoped, tag = 'input window, operand 7, single buffered']
    #allocation15 [shape = 's32[1]{0}', space=sflag, size = 0x4, scoped, tag = 'scoped memory for tpu_custom_call.1']
    #allocation16 [shape = 'u8[4096]{0}', space=vmem, size = 0x1000, scoped, tag = 'input window, operand 8, single buffered']
    #allocation17 [shape = 'u8[512]{0}', space=vmem, size = 0x400, scoped, tag = 'input window, operand 9, single buffered']
    #allocation18 [shape = 's32[1]{0}', space=sflag, size = 0x4, scoped, tag = 'scoped memory for tpu_custom_call.1']
    #allocation19 [shape = 'u8[512]{0}', space=vmem, size = 0x400, scoped, tag = 'input window, operand 11, single buffered']
    #allocation20 [shape = 'u8[512]{0}', space=vmem, size = 0x400, scoped, tag = 'input window, operand 13, single buffered']
    #allocation21 [shape = 's32[1]{0}', space=sflag, size = 0x4, scoped, tag = 'scoped memory for tpu_custom_call.1']
    #allocation22 [shape = 'u8[512]{0}', space=vmem, size = 0x400, scoped, tag = 'input window, operand 15, single buffered']
    #allocation23 [shape = 'u8[8192]{0}', space=vmem, size = 0x2000, scoped, tag = 'input window, operand 16, single buffered']
    #allocation24 [shape = 's32[1]{0}', space=sflag, size = 0x4, scoped, tag = 'scoped memory for tpu_custom_call.1']
    #allocation25 [shape = 'u8[512]{0}', space=vmem, size = 0x400, scoped, tag = 'input window, operand 17, single buffered']
    #allocation26 [shape = 'u8[4096]{0}', space=vmem, size = 0x1000, scoped, tag = 'output window, operand 0, single buffered']
    %25 = vsyncpa [#allocation3], 0
    %26 = vsyncpa [#allocation6], 0
    %27 = vsyncpa [#allocation9], 0
    %28 = vsyncpa [#allocation12], 0
    %29 = vsyncpa [#allocation15], 0
    %30 = vsyncpa [#allocation18], 0
    %31 = vsyncpa [#allocation21], 0
    %32 = vsyncpa [#allocation24], 0
    %33 = vsyncpa [#allocation4], 0
    // Predicated region
    $region2: #{tpu_custom_call.1} parent=1 // pred_check
      _
    $region3: #{tpu_custom_call.1} parent=1 // pred_check_branch
      %35 = sbr.rel (0) target = $region5
    $region4: #{tpu_custom_call.1} parent=1 // pred_region
      %s37 = ssub.s32 128, 128
      %38 = vsyncadd [#allocation3], %s37
      %s40 = sshll.u32 [#allocation2], 4
      %s41 = int_to_ptr.vmem [resolvable:$true] %s40
      %43 = dma.hbm_to_vmem [thread:$0]  %s0, 128, %s41, [#allocation3]
    $region5: #{tpu_custom_call.1} parent=1 // pred_fallthru
      _
    // Predicated region
    $region6: #{tpu_custom_call.1} parent=1 // pred_check
      _
    $region7: #{tpu_custom_call.1} parent=1 // pred_check_branch
      %45 = sbr.rel (0) target = $region9
    $region8: #{tpu_custom_call.1} parent=1 // pred_region
      %s47 = ssub.s32 128, 128
      %48 = vsyncadd [#allocation6], %s47
      %s49 = sshll.u32 [#allocation5], 4
      %s50 = int_to_ptr.vmem [resolvable:$true] %s49
      %55 = dma.hbm_to_vmem [thread:$0]  %s1, 128, %s50, [#allocation6], 64, 64, 4
    $region9: #{tpu_custom_call.1} parent=1 // pred_fallthru
      _
    // Predicated region
    $region10: #{tpu_custom_call.1} parent=1 // pred_check
      _
    $region11: #{tpu_custom_call.1} parent=1 // pred_check_branch
      %57 = sbr.rel (0) target = $region13
    $region12: #{tpu_custom_call.1} parent=1 // pred_region
      %s59 = ssub.s32 16, 16
      %60 = vsyncadd [#allocation6], %s59
      %s62 = sshll.u32 [#allocation7], 4
      %s63 = int_to_ptr.vmem [resolvable:$true] %s62
      %65 = dma.hbm_to_vmem [thread:$0]  %s2, 16, %s63, [#allocation6]
    $region13: #{tpu_custom_call.1} parent=1 // pred_fallthru
      _
    // Predicated region
    $region14: #{tpu_custom_call.1} parent=1 // pred_check
      _
    $region15: #{tpu_custom_call.1} parent=1 // pred_check_branch
      %67 = sbr.rel (0) target = $region17
    $region16: #{tpu_custom_call.1} parent=1 // pred_region
      %s69 = ssub.s32 128, 128
      %70 = vsyncadd [#allocation9], %s69
      %s71 = sshll.u32 [#allocation8], 4
      %s72 = int_to_ptr.vmem [resolvable:$true] %s71
      %77 = dma.hbm_to_vmem [thread:$0]  %s3, 128, %s72, [#allocation9], 64, 64, 4
    $region17: #{tpu_custom_call.1} parent=1 // pred_fallthru
      _
    // Predicated region
    $region18: #{tpu_custom_call.1} parent=1 // pred_check
      _
    $region19: #{tpu_custom_call.1} parent=1 // pred_check_branch
      %79 = sbr.rel (0) target = $region21
    $region20: #{tpu_custom_call.1} parent=1 // pred_region
      %s81 = ssub.s32 16, 16
      %82 = vsyncadd [#allocation9], %s81
      %s84 = sshll.u32 [#allocation10], 4
      %s85 = int_to_ptr.vmem [resolvable:$true] %s84
      %87 = dma.hbm_to_vmem [thread:$0]  %s4, 16, %s85, [#allocation9]
    $region21: #{tpu_custom_call.1} parent=1 // pred_fallthru
      _
    // Predicated region
    $region22: #{tpu_custom_call.1} parent=1 // pred_check
      _
    $region23: #{tpu_custom_call.1} parent=1 // pred_check_branch
      %89 = sbr.rel (0) target = $region25
    $region24: #{tpu_custom_call.1} parent=1 // pred_region
      %s91 = ssub.s32 128, 128
      %92 = vsyncadd [#allocation12], %s91
      %s93 = sshll.u32 [#allocation11], 4
      %s94 = int_to_ptr.vmem [resolvable:$true] %s93
      %99 = dma.hbm_to_vmem [thread:$0]  %s5, 128, %s94, [#allocation12], 64, 64, 4
    $region25: #{tpu_custom_call.1} parent=1 // pred_fallthru
      _
    // Predicated region
    $region26: #{tpu_custom_call.1} parent=1 // pred_check
      _
    $region27: #{tpu_custom_call.1} parent=1 // pred_check_branch
      %101 = sbr.rel (0) target = $region29
    $region28: #{tpu_custom_call.1} parent=1 // pred_region
      %s103 = ssub.s32 16, 16
      %104 = vsyncadd [#allocation12], %s103
      %s106 = sshll.u32 [#allocation13], 4
      %s107 = int_to_ptr.vmem [resolvable:$true] %s106
      %109 = dma.hbm_to_vmem [thread:$0]  %s6, 16, %s107, [#allocation12]
    $region29: #{tpu_custom_call.1} parent=1 // pred_fallthru
      _
    // Predicated region
    $region30: #{tpu_custom_call.1} parent=1 // pred_check
      _
    $region31: #{tpu_custom_call.1} parent=1 // pred_check_branch
      %111 = sbr.rel (0) target = $region33
    $region32: #{tpu_custom_call.1} parent=1 // pred_region
      %s113 = ssub.s32 128, 128
      %114 = vsyncadd [#allocation15], %s113
      %s115 = sshll.u32 [#allocation14], 4
      %s116 = int_to_ptr.vmem [resolvable:$true] %s115
      %121 = dma.hbm_to_vmem [thread:$0]  %s7, 128, %s116, [#allocation15], 64, 64, 4
    $region33: #{tpu_custom_call.1} parent=1 // pred_fallthru
      _
    // Predicated region
    $region34: #{tpu_custom_call.1} parent=1 // pred_check
      _
    $region35: #{tpu_custom_call.1} parent=1 // pred_check_branch
      %123 = sbr.rel (0) target = $region37
    $region36: #{tpu_custom_call.1} parent=1 // pred_region
      %s125 = ssub.s32 128, 128
      %126 = vsyncadd [#allocation15], %s125
      %s127 = sshll.u32 [#allocation16], 4
      %s128 = int_to_ptr.vmem [resolvable:$true] %s127
      %133 = dma.hbm_to_vmem [thread:$0]  %s8, 128, %s128, [#allocation15], 64, 64, 4
    $region37: #{tpu_custom_call.1} parent=1 // pred_fallthru
      _
    // Predicated region
    $region38: #{tpu_custom_call.1} parent=1 // pred_check
      _
    $region39: #{tpu_custom_call.1} parent=1 // pred_check_branch
      %135 = sbr.rel (0) target = $region41
    $region40: #{tpu_custom_call.1} parent=1 // pred_region
      %s137 = ssub.s32 16, 16
      %138 = vsyncadd [#allocation18], %s137
      %s140 = sshll.u32 [#allocation17], 4
      %s141 = int_to_ptr.vmem [resolvable:$true] %s140
      %143 = dma.hbm_to_vmem [thread:$0]  %s9, 16, %s141, [#allocation18]
    $region41: #{tpu_custom_call.1} parent=1 // pred_fallthru
      _
    // Predicated region
    $region42: #{tpu_custom_call.1} parent=1 // pred_check
      _
    $region43: #{tpu_custom_call.1} parent=1 // pred_check_branch
      %145 = sbr.rel (0) target = $region45
    $region44: #{tpu_custom_call.1} parent=1 // pred_region
      _
    $region45: #{tpu_custom_call.1} parent=1 // pred_fallthru
      _
    // Predicated region
    $region46: #{tpu_custom_call.1} parent=1 // pred_check
      _
    $region47: #{tpu_custom_call.1} parent=1 // pred_check_branch
      %147 = sbr.rel (0) target = $region49
    $region48: #{tpu_custom_call.1} parent=1 // pred_region
      %s149 = ssub.s32 16, 16
      %150 = vsyncadd [#allocation18], %s149
      %s152 = sshll.u32 [#allocation19], 4
      %s153 = int_to_ptr.vmem [resolvable:$true] %s152
      %155 = dma.hbm_to_vmem [thread:$0]  %s11, 16, %s153, [#allocation18]
    $region49: #{tpu_custom_call.1} parent=1 // pred_fallthru
      _
    // Predicated region
    $region50: #{tpu_custom_call.1} parent=1 // pred_check
      _
    $region51: #{tpu_custom_call.1} parent=1 // pred_check_branch
      %157 = sbr.rel (0) target = $region53
    $region52: #{tpu_custom_call.1} parent=1 // pred_region
      _
    $region53: #{tpu_custom_call.1} parent=1 // pred_fallthru
      _
    // Predicated region
    $region54: #{tpu_custom_call.1} parent=1 // pred_check
      _
    $region55: #{tpu_custom_call.1} parent=1 // pred_check_branch
      %159 = sbr.rel (0) target = $region57
    $region56: #{tpu_custom_call.1} parent=1 // pred_region
      %s161 = ssub.s32 16, 16
      %162 = vsyncadd [#allocation21], %s161
      %s164 = sshll.u32 [#allocation20], 4
      %s165 = int_to_ptr.vmem [resolvable:$true] %s164
      %167 = dma.hbm_to_vmem [thread:$0]  %s13, 16, %s165, [#allocation21]
    $region57: #{tpu_custom_call.1} parent=1 // pred_fallthru
      _
    // Predicated region
    $region58: #{tpu_custom_call.1} parent=1 // pred_check
      _
    $region59: #{tpu_custom_call.1} parent=1 // pred_check_branch
      %169 = sbr.rel (0) target = $region61
    $region60: #{tpu_custom_call.1} parent=1 // pred_region
      _
    $region61: #{tpu_custom_call.1} parent=1 // pred_fallthru
      _
    // Predicated region
    $region62: #{tpu_custom_call.1} parent=1 // pred_check
      _
    $region63: #{tpu_custom_call.1} parent=1 // pred_check_branch
      %171 = sbr.rel (0) target = $region65
    $region64: #{tpu_custom_call.1} parent=1 // pred_region
      %s173 = ssub.s32 16, 16
      %174 = vsyncadd [#allocation21], %s173
      %s176 = sshll.u32 [#allocation22], 4
      %s177 = int_to_ptr.vmem [resolvable:$true] %s176
      %179 = dma.hbm_to_vmem [thread:$0]  %s15, 16, %s177, [#allocation21]
    $region65: #{tpu_custom_call.1} parent=1 // pred_fallthru
      _
    // Predicated region
    $region66: #{tpu_custom_call.1} parent=1 // pred_check
      _
    $region67: #{tpu_custom_call.1} parent=1 // pred_check_branch
      %181 = sbr.rel (0) target = $region69
    $region68: #{tpu_custom_call.1} parent=1 // pred_region
      %s183 = ssub.s32 256, 256
      %184 = vsyncadd [#allocation24], %s183
      %s185 = sshll.u32 [#allocation23], 4
      %s186 = int_to_ptr.vmem [resolvable:$true] %s185
      %191 = dma.hbm_to_vmem [thread:$0]  %s16, 256, %s186, [#allocation24], 64, 64, 4
    $region69: #{tpu_custom_call.1} parent=1 // pred_fallthru
      _
    // Predicated region
    $region70: #{tpu_custom_call.1} parent=1 // pred_check
      _
    $region71: #{tpu_custom_call.1} parent=1 // pred_check_branch
      %193 = sbr.rel (0) target = $region73
    $region72: #{tpu_custom_call.1} parent=1 // pred_region
      %s195 = ssub.s32 16, 16
      %196 = vsyncadd [#allocation24], %s195
      %s198 = sshll.u32 [#allocation25], 4
      %s199 = int_to_ptr.vmem [resolvable:$true] %s198
      %201 = dma.hbm_to_vmem [thread:$0]  %s17, 16, %s199, [#allocation24]
    $region73: #{tpu_custom_call.1} parent=1 // pred_fallthru
      _
    // Predicated region
    $region74: #{tpu_custom_call.1} parent=1 // pred_check
      _
    $region75: #{tpu_custom_call.1} parent=1 // pred_check_branch
      %203 = sbr.rel (0) target = $region77
    $region76: #{tpu_custom_call.1} parent=1 // pred_region
      _
    $region77: #{tpu_custom_call.1} parent=1 // pred_fallthru
      _
    // Predicated region
    $region78: #{tpu_custom_call.1} parent=1 // pred_check
      _
    $region79: #{tpu_custom_call.1} parent=1 // pred_check_branch
      %205 = sbr.rel (0) target = $region81
    $region80: #{tpu_custom_call.1} parent=1 // pred_region
      _
    $region81: #{tpu_custom_call.1} parent=1 // pred_fallthru
      _
    // Predicated region
    $region82: #{tpu_custom_call.1} parent=1 // pred_check
      _
    $region83: #{tpu_custom_call.1} parent=1 // pred_check_branch
      %207 = sbr.rel (0) target = $region85
    $region84: #{tpu_custom_call.1} parent=1 // pred_region
      %208 = dma.done [#allocation3], 128
    $region85: #{tpu_custom_call.1} parent=1 // pred_fallthru
      _
    // Predicated region
    $region86: #{tpu_custom_call.1} parent=1 // pred_check
      _
    $region87: #{tpu_custom_call.1} parent=1 // pred_check_branch
      %210 = sbr.rel (0) target = $region89
    $region88: #{tpu_custom_call.1} parent=1 // pred_region
      %211 = dma.done [#allocation6], 128
    $region89: #{tpu_custom_call.1} parent=1 // pred_fallthru
      _
    // Predicated region
    $region90: #{tpu_custom_call.1} parent=1 // pred_check
      _
    $region91: #{tpu_custom_call.1} parent=1 // pred_check_branch
      %213 = sbr.rel (0) target = $region93
    $region92: #{tpu_custom_call.1} parent=1 // pred_region
      %214 = dma.done [#allocation6], 16
    $region93: #{tpu_custom_call.1} parent=1 // pred_fallthru
      _
    // Predicated region
    $region94: #{tpu_custom_call.1} parent=1 // pred_check
      _
    $region95: #{tpu_custom_call.1} parent=1 // pred_check_branch
      %216 = sbr.rel (0) target = $region97
    $region96: #{tpu_custom_call.1} parent=1 // pred_region
      %217 = dma.done [#allocation9], 128
    $region97: #{tpu_custom_call.1} parent=1 // pred_fallthru
      _
    // Predicated region
    $region98: #{tpu_custom_call.1} parent=1 // pred_check
      _
    $region99: #{tpu_custom_call.1} parent=1 // pred_check_branch
      %219 = sbr.rel (0) target = $region101
    $region100: #{tpu_custom_call.1} parent=1 // pred_region
      %220 = dma.done [#allocation9], 16
    $region101: #{tpu_custom_call.1} parent=1 // pred_fallthru
      _
    // Predicated region
    $region102: #{tpu_custom_call.1} parent=1 // pred_check
      _
    $region103: #{tpu_custom_call.1} parent=1 // pred_check_branch
      %222 = sbr.rel (0) target = $region105
    $region104: #{tpu_custom_call.1} parent=1 // pred_region
      %223 = dma.done [#allocation12], 128
    $region105: #{tpu_custom_call.1} parent=1 // pred_fallthru
      _
    // Predicated region
    $region106: #{tpu_custom_call.1} parent=1 // pred_check
      _
    $region107: #{tpu_custom_call.1} parent=1 // pred_check_branch
      %225 = sbr.rel (0) target = $region109
    $region108: #{tpu_custom_call.1} parent=1 // pred_region
      %226 = dma.done [#allocation12], 16
    $region109: #{tpu_custom_call.1} parent=1 // pred_fallthru
      _
    // Predicated region
    $region110: #{tpu_custom_call.1} parent=1 // pred_check
      _
    $region111: #{tpu_custom_call.1} parent=1 // pred_check_branch
      %228 = sbr.rel (0) target = $region113
    $region112: #{tpu_custom_call.1} parent=1 // pred_region
      %229 = dma.done [#allocation15], 128
    $region113: #{tpu_custom_call.1} parent=1 // pred_fallthru
      _
    // Predicated region
    $region114: #{tpu_custom_call.1} parent=1 // pred_check
      _
    $region115: #{tpu_custom_call.1} parent=1 // pred_check_branch
      %231 = sbr.rel (0) target = $region117
    $region116: #{tpu_custom_call.1} parent=1 // pred_region
      %232 = dma.done [#allocation15], 128
    $region117: #{tpu_custom_call.1} parent=1 // pred_fallthru
      _
    // Predicated region
    $region118: #{tpu_custom_call.1} parent=1 // pred_check
      _
    $region119: #{tpu_custom_call.1} parent=1 // pred_check_branch
      %234 = sbr.rel (0) target = $region121
    $region120: #{tpu_custom_call.1} parent=1 // pred_region
      %235 = dma.done [#allocation18], 16
    $region121: #{tpu_custom_call.1} parent=1 // pred_fallthru
      _
    // Predicated region
    $region122: #{tpu_custom_call.1} parent=1 // pred_check
      _
    $region123: #{tpu_custom_call.1} parent=1 // pred_check_branch
      %237 = sbr.rel (0) target = $region125
    $region124: #{tpu_custom_call.1} parent=1 // pred_region
      %238 = dma.done [#allocation18], 16
    $region125: #{tpu_custom_call.1} parent=1 // pred_fallthru
      _
    // Predicated region
    $region126: #{tpu_custom_call.1} parent=1 // pred_check
      _
    $region127: #{tpu_custom_call.1} parent=1 // pred_check_branch
      %240 = sbr.rel (0) target = $region129
    $region128: #{tpu_custom_call.1} parent=1 // pred_region
      %241 = dma.done [#allocation21], 16
    $region129: #{tpu_custom_call.1} parent=1 // pred_fallthru
      _
    // Predicated region
    $region130: #{tpu_custom_call.1} parent=1 // pred_check
      _
    $region131: #{tpu_custom_call.1} parent=1 // pred_check_branch
      %243 = sbr.rel (0) target = $region133
    $region132: #{tpu_custom_call.1} parent=1 // pred_region
      %244 = dma.done [#allocation21], 16
    $region133: #{tpu_custom_call.1} parent=1 // pred_fallthru
      _
    // Predicated region
    $region134: #{tpu_custom_call.1} parent=1 // pred_check
      _
    $region135: #{tpu_custom_call.1} parent=1 // pred_check_branch
      %246 = sbr.rel (0) target = $region137
    $region136: #{tpu_custom_call.1} parent=1 // pred_region
      %247 = dma.done [#allocation24], 256
    $region137: #{tpu_custom_call.1} parent=1 // pred_fallthru
      _
    // Predicated region
    $region138: #{tpu_custom_call.1} parent=1 // pred_check
      _
    $region139: #{tpu_custom_call.1} parent=1 // pred_check_branch
      %249 = sbr.rel (0) target = $region141
    $region140: #{tpu_custom_call.1} parent=1 // pred_region
      %250 = dma.done [#allocation24], 16
    $region141: #{tpu_custom_call.1} parent=1 // pred_fallthru
      _
    %v252 = vld [vmem:[#allocation2] sm:$0xff]
    %v253 = vpack.c.bf16 %v252, %v252
    %v254 = vld [vmem:[#allocation5] sm:$0xf]
    %v255 = vld [vmem:[#allocation5 + $0x4] sm:$0xf]
    %v256 = vld [vmem:[#allocation7] sm:$0x1]
    %v258 = vlaneseq
    %v259 = vshrl.u32 %v258, 7
    %v260 = vsub.s32 0, %v259
    %v261 = vrot.slane %v256, %v260
    %v265 = vunpack.c.l.b16 %v254
    %v266 = vunpack.c.l.b16 %v255
    %v267 = vpack.c.b16 %v266, %v265
    %vm269 = vcmask 130048
    %v271 = vsel %vm269, %v253, 0
    %273 = vmatprep.subr.bf16.mxu0 0
    %274 = vmatpush1.bf16.msra.mxu0 %v267
    %275 = vmatprep.subr.bf16.mxu0 0
    %276 = vmatpush1.bf16.msra.mxu0 0
    %277 = vmatprep.subr.bf16.mxu0 0
    %278 = vmatpush1.bf16.msra.mxu0 0
    %279 = vmatprep.subr.bf16.mxu0 0
    %280 = vmatpush1.bf16.msra.mxu0 0
    %281 = vmatprep.subr.bf16.mxu0 0
    %282 = vmatpush1.bf16.msra.mxu0 0
    %283 = vmatprep.subr.bf16.mxu0 0
    %284 = vmatpush1.bf16.msra.mxu0 0
    %285 = vmatprep.subr.bf16.mxu0 0
    %286 = vmatpush1.bf16.msra.mxu0 0
    %287 = vmatprep.subr.bf16.mxu0 0
    %288 = vmatpush1.bf16.msra.mxu0 0
    %289 = vmatprep.subr.bf16.mxu0 0
    %290 = vmatpush1.bf16.msra.mxu0 0
    %291 = vmatprep.subr.bf16.mxu0 0
    %292 = vmatpush1.bf16.msra.mxu0 0
    %293 = vmatprep.subr.bf16.mxu0 0
    %294 = vmatpush1.bf16.msra.mxu0 0
    %295 = vmatprep.subr.bf16.mxu0 0
    %296 = vmatpush1.bf16.msra.mxu0 0
    %297 = vmatprep.subr.bf16.mxu0 0
    %298 = vmatpush1.bf16.msra.mxu0 0
    %299 = vmatprep.subr.bf16.mxu0 0
    %300 = vmatpush1.bf16.msra.mxu0 0
    %301 = vmatprep.subr.bf16.mxu0 0
    %302 = vmatpush1.bf16.msra.mxu0 0
    %303 = vmatprep.subr.bf16.mxu0 0
    %304 = vmatpush1.bf16.msra.mxu0 0
    %305 = vmatprep.mubr.bf16.mxu0 0
    %306 = vmatmul.mubr.bf16.gmra.mrb[0].mxu0 %v271
    %v307 = vpop.f32.mrb[0].mxu0
    %v308 = vadd.f32 %v261, %v307
    %v309 = vpop.f32.mrb[0].mxu0
    %v310 = vpop.f32.mrb[0].mxu0
    %v311 = vpop.f32.mrb[0].mxu0
    %312 = vdwg.mxu0
    %v313 = vld [vmem:[#allocation8] sm:$0xf]
    %v314 = vld [vmem:[#allocation8 + $0x4] sm:$0xf]
    %v315 = vld [vmem:[#allocation10] sm:$0x1]
    %v317 = vlaneseq
    %v318 = vshrl.u32 %v317, 7
    %v319 = vsub.s32 0, %v318
    %v320 = vrot.slane %v315, %v319
    %v324 = vunpack.c.l.b16 %v313
    %v325 = vunpack.c.l.b16 %v314
    %v326 = vpack.c.b16 %v325, %v324
    %328 = vmatprep.subr.bf16.mxu0 0
    %329 = vmatpush1.bf16.msra.mxu0 %v326
    %330 = vmatprep.subr.bf16.mxu0 0
    %331 = vmatpush1.bf16.msra.mxu0 0
    %332 = vmatprep.subr.bf16.mxu0 0
    %333 = vmatpush1.bf16.msra.mxu0 0
    %334 = vmatprep.subr.bf16.mxu0 0
    %335 = vmatpush1.bf16.msra.mxu0 0
    %336 = vmatprep.subr.bf16.mxu0 0
    %337 = vmatpush1.bf16.msra.mxu0 0
    %338 = vmatprep.subr.bf16.mxu0 0
    %339 = vmatpush1.bf16.msra.mxu0 0
    %340 = vmatprep.subr.bf16.mxu0 0
    %341 = vmatpush1.bf16.msra.mxu0 0
    %342 = vmatprep.subr.bf16.mxu0 0
    %343 = vmatpush1.bf16.msra.mxu0 0
    %344 = vmatprep.subr.bf16.mxu0 0
    %345 = vmatpush1.bf16.msra.mxu0 0
    %346 = vmatprep.subr.bf16.mxu0 0
    %347 = vmatpush1.bf16.msra.mxu0 0
    %348 = vmatprep.subr.bf16.mxu0 0
    %349 = vmatpush1.bf16.msra.mxu0 0
    %350 = vmatprep.subr.bf16.mxu0 0
    %351 = vmatpush1.bf16.msra.mxu0 0
    %352 = vmatprep.subr.bf16.mxu0 0
    %353 = vmatpush1.bf16.msra.mxu0 0
    %354 = vmatprep.subr.bf16.mxu0 0
    %355 = vmatpush1.bf16.msra.mxu0 0
    %356 = vmatprep.subr.bf16.mxu0 0
    %357 = vmatpush1.bf16.msra.mxu0 0
    %358 = vmatprep.subr.bf16.mxu0 0
    %359 = vmatpush1.bf16.msra.mxu0 0
    %360 = vmatprep.mubr.bf16.mxu0 0
    %361 = vmatmul.mubr.bf16.gmra.mrb[0].mxu0 %v271
    %v362 = vpop.f32.mrb[0].mxu0
    %v363 = vadd.f32 %v320, %v362
    %v364 = vpop.f32.mrb[0].mxu0
    %v365 = vpop.f32.mrb[0].mxu0
    %v366 = vpop.f32.mrb[0].mxu0
    %367 = vdwg.mxu0
    %v368 = vld [vmem:[#allocation11] sm:$0xf]
    %v369 = vld [vmem:[#allocation11 + $0x4] sm:$0xf]
    %v370 = vld [vmem:[#allocation13] sm:$0x1]
    %v372 = vlaneseq
    %v373 = vshrl.u32 %v372, 7
    %v374 = vsub.s32 0, %v373
    %v375 = vrot.slane %v370, %v374
    %v379 = vunpack.c.l.b16 %v368
    %v380 = vunpack.c.l.b16 %v369
    %v381 = vpack.c.b16 %v380, %v379
    %383 = vmatprep.subr.bf16.mxu0 0
    %384 = vmatpush1.bf16.msra.mxu0 %v381
    %385 = vmatprep.subr.bf16.mxu0 0
    %386 = vmatpush1.bf16.msra.mxu0 0
    %387 = vmatprep.subr.bf16.mxu0 0
    %388 = vmatpush1.bf16.msra.mxu0 0
    %389 = vmatprep.subr.bf16.mxu0 0
    %390 = vmatpush1.bf16.msra.mxu0 0
    %391 = vmatprep.subr.bf16.mxu0 0
    %392 = vmatpush1.bf16.msra.mxu0 0
    %393 = vmatprep.subr.bf16.mxu0 0
    %394 = vmatpush1.bf16.msra.mxu0 0
    %395 = vmatprep.subr.bf16.mxu0 0
    %396 = vmatpush1.bf16.msra.mxu0 0
    %397 = vmatprep.subr.bf16.mxu0 0
    %398 = vmatpush1.bf16.msra.mxu0 0
    %399 = vmatprep.subr.bf16.mxu0 0
    %400 = vmatpush1.bf16.msra.mxu0 0
    %401 = vmatprep.subr.bf16.mxu0 0
    %402 = vmatpush1.bf16.msra.mxu0 0
    %403 = vmatprep.subr.bf16.mxu0 0
    %404 = vmatpush1.bf16.msra.mxu0 0
    %405 = vmatprep.subr.bf16.mxu0 0
    %406 = vmatpush1.bf16.msra.mxu0 0
    %407 = vmatprep.subr.bf16.mxu0 0
    %408 = vmatpush1.bf16.msra.mxu0 0
    %409 = vmatprep.subr.bf16.mxu0 0
    %410 = vmatpush1.bf16.msra.mxu0 0
    %411 = vmatprep.subr.bf16.mxu0 0
    %412 = vmatpush1.bf16.msra.mxu0 0
    %413 = vmatprep.subr.bf16.mxu0 0
    %414 = vmatpush1.bf16.msra.mxu0 0
    %415 = vmatprep.mubr.bf16.mxu0 0
    %416 = vmatmul.mubr.bf16.gmra.mrb[0].mxu0 %v271
    %v417 = vpop.f32.mrb[0].mxu0
    %v418 = vadd.f32 %v375, %v417
    %v419 = vpop.f32.mrb[0].mxu0
    %v420 = vpop.f32.mrb[0].mxu0
    %v421 = vpop.f32.mrb[0].mxu0
    %422 = vdwg.mxu0
    %v423 = vpack.c.bf16 %v308, %v308
    %v424 = vpack.c.bf16 %v363, %v363
    %v426 = vsel %vm269, %v423, 0
    %v429 = vsel %vm269, %v424, 0
    %431 = vmatprep.subr.bf16.mxu0 0
    %432 = vmatpush1.bf16.xpose.msra.mxu0 %v429
    %433 = vmatprep.subr.bf16.mxu0 0
    %434 = vmatpush1.bf16.xpose.msra.mxu0 0
    %435 = vmatprep.subr.bf16.mxu0 0
    %436 = vmatpush1.bf16.xpose.msra.mxu0 0
    %437 = vmatprep.subr.bf16.mxu0 0
    %438 = vmatpush1.bf16.xpose.msra.mxu0 0
    %439 = vmatprep.subr.bf16.mxu0 0
    %440 = vmatpush1.bf16.xpose.msra.mxu0 0
    %441 = vmatprep.subr.bf16.mxu0 0
    %442 = vmatpush1.bf16.xpose.msra.mxu0 0
    %443 = vmatprep.subr.bf16.mxu0 0
    %444 = vmatpush1.bf16.xpose.msra.mxu0 0
    %445 = vmatprep.subr.bf16.mxu0 0
    %446 = vmatpush1.bf16.xpose.msra.mxu0 0
    %447 = vmatprep.subr.bf16.mxu0 0
    %448 = vmatpush1.bf16.xpose.msra.mxu0 0
    %449 = vmatprep.subr.bf16.mxu0 0
    %450 = vmatpush1.bf16.xpose.msra.mxu0 0
    %451 = vmatprep.subr.bf16.mxu0 0
    %452 = vmatpush1.bf16.xpose.msra.mxu0 0
    %453 = vmatprep.subr.bf16.mxu0 0
    %454 = vmatpush1.bf16.xpose.msra.mxu0 0
    %455 = vmatprep.subr.bf16.mxu0 0
    %456 = vmatpush1.bf16.xpose.msra.mxu0 0
    %457 = vmatprep.subr.bf16.mxu0 0
    %458 = vmatpush1.bf16.xpose.msra.mxu0 0
    %459 = vmatprep.subr.bf16.mxu0 0
    %460 = vmatpush1.bf16.xpose.msra.mxu0 0
    %461 = vmatprep.subr.bf16.mxu0 0
    %462 = vmatpush1.bf16.xpose.msra.mxu0 0
    %463 = vmatprep.mubr.bf16.mxu0 0
    %464 = vmatmul.mubr.bf16.gmra.mrb[0].mxu0 %v426
    %v465 = vpop.f32.mrb[0].mxu0
    %v466 = vadd.f32 0.0, %v465
    %v467 = vpop.f32.mrb[0].mxu0
    %v468 = vpop.f32.mrb[0].mxu0
    %v469 = vpop.f32.mrb[0].mxu0
    %470 = vdwg.mxu0
    %v471 = vmul.f32 %v466, 0.25
    %vm472 = vcmask 64512
    %v473 = vsel %vm472, %v471, -inf
    %474 = vmax.xlane.f32.xlu0 %v473
    %v475 = vpop.xlane.xlu0 %474
    %v476 = vsub.f32 %v471, %v475
    %v477 = vmul.f32 %v476, 1.442695
    %v478 = vpow.pop %v477
    %v479 = vsel %vm472, %v478, 0.0
    %480 = vadd.xlane.f32.xlu0 %v479
    %v481 = vpop.xlane.xlu0 %480
    %v482 = vrcp.pop %v481
    %v483 = vmul.f32 %v478, %v482
    %v484 = vpack.c.bf16 %v483, %v483
    %v485 = vpack.c.bf16 %v418, %v418
    %v487 = vsel %vm472, %v484, 0
    %vm489 = vcmask 1043456
    %v491 = vsel %vm489, %v485, 0
    %493 = vmatprep.subr.bf16.mxu0 0
    %494 = vmatpush1.bf16.msra.mxu0 %v491
    %495 = vmatprep.subr.bf16.mxu0 0
    %496 = vmatpush1.bf16.msra.mxu0 0
    %497 = vmatprep.subr.bf16.mxu0 0
    %498 = vmatpush1.bf16.msra.mxu0 0
    %499 = vmatprep.subr.bf16.mxu0 0
    %500 = vmatpush1.bf16.msra.mxu0 0
    %501 = vmatprep.subr.bf16.mxu0 0
    %502 = vmatpush1.bf16.msra.mxu0 0
    %503 = vmatprep.subr.bf16.mxu0 0
    %504 = vmatpush1.bf16.msra.mxu0 0
    %505 = vmatprep.subr.bf16.mxu0 0
    %506 = vmatpush1.bf16.msra.mxu0 0
    %507 = vmatprep.subr.bf16.mxu0 0
    %508 = vmatpush1.bf16.msra.mxu0 0
    %509 = vmatprep.subr.bf16.mxu0 0
    %510 = vmatpush1.bf16.msra.mxu0 0
    %511 = vmatprep.subr.bf16.mxu0 0
    %512 = vmatpush1.bf16.msra.mxu0 0
    %513 = vmatprep.subr.bf16.mxu0 0
    %514 = vmatpush1.bf16.msra.mxu0 0
    %515 = vmatprep.subr.bf16.mxu0 0
    %516 = vmatpush1.bf16.msra.mxu0 0
    %517 = vmatprep.subr.bf16.mxu0 0
    %518 = vmatpush1.bf16.msra.mxu0 0
    %519 = vmatprep.subr.bf16.mxu0 0
    %520 = vmatpush1.bf16.msra.mxu0 0
    %521 = vmatprep.subr.bf16.mxu0 0
    %522 = vmatpush1.bf16.msra.mxu0 0
    %523 = vmatprep.subr.bf16.mxu0 0
    %524 = vmatpush1.bf16.msra.mxu0 0
    %525 = vmatprep.mubr.bf16.mxu0 0
    %526 = vmatmul.mubr.bf16.gmra.mrb[0].mxu0 %v487
    %v527 = vpop.f32.mrb[0].mxu0
    %v528 = vadd.f32 0.0, %v527
    %v529 = vpop.f32.mrb[0].mxu0
    %v530 = vpop.f32.mrb[0].mxu0
    %v531 = vpop.f32.mrb[0].mxu0
    %532 = vdwg.mxu0
    %v533 = vld [vmem:[#allocation14] sm:$0xf]
    %v534 = vld [vmem:[#allocation14 + $0x4] sm:$0xf]
    %v535 = vpack.c.bf16 %v528, %v528
    %v536 = vld [vmem:[#allocation16] sm:$0xf]
    %v537 = vld [vmem:[#allocation16 + $0x4] sm:$0xf]
    %v540 = vunpack.c.l.b16 %v536
    %v541 = vunpack.c.l.b16 %v537
    %v542 = vpack.c.b16 %v541, %v540
    %v545 = vsel %vm269, %v535, 0
    %547 = vmatprep.subr.bf16.mxu0 0
    %548 = vmatpush1.bf16.msra.mxu0 %v542
    %549 = vmatprep.subr.bf16.mxu0 0
    %550 = vmatpush1.bf16.msra.mxu0 0
    %551 = vmatprep.subr.bf16.mxu0 0
    %552 = vmatpush1.bf16.msra.mxu0 0
    %553 = vmatprep.subr.bf16.mxu0 0
    %554 = vmatpush1.bf16.msra.mxu0 0
    %555 = vmatprep.subr.bf16.mxu0 0
    %556 = vmatpush1.bf16.msra.mxu0 0
    %557 = vmatprep.subr.bf16.mxu0 0
    %558 = vmatpush1.bf16.msra.mxu0 0
    %559 = vmatprep.subr.bf16.mxu0 0
    %560 = vmatpush1.bf16.msra.mxu0 0
    %561 = vmatprep.subr.bf16.mxu0 0
    %562 = vmatpush1.bf16.msra.mxu0 0
    %563 = vmatprep.subr.bf16.mxu0 0
    %564 = vmatpush1.bf16.msra.mxu0 0
    %565 = vmatprep.subr.bf16.mxu0 0
    %566 = vmatpush1.bf16.msra.mxu0 0
    %567 = vmatprep.subr.bf16.mxu0 0
    %568 = vmatpush1.bf16.msra.mxu0 0
    %569 = vmatprep.subr.bf16.mxu0 0
    %570 = vmatpush1.bf16.msra.mxu0 0
    %571 = vmatprep.subr.bf16.mxu0 0
    %572 = vmatpush1.bf16.msra.mxu0 0
    %573 = vmatprep.subr.bf16.mxu0 0
    %574 = vmatpush1.bf16.msra.mxu0 0
    %575 = vmatprep.subr.bf16.mxu0 0
    %576 = vmatpush1.bf16.msra.mxu0 0
    %577 = vmatprep.subr.bf16.mxu0 0
    %578 = vmatpush1.bf16.msra.mxu0 0
    %579 = vmatprep.mubr.bf16.mxu0 0
    %580 = vmatmul.mubr.bf16.gmra.mrb[0].mxu0 %v545
    %v581 = vpop.f32.mrb[0].mxu0
    %v582 = vadd.f32 0.0, %v581
    %v583 = vpop.f32.mrb[0].mxu0
    %v584 = vpop.f32.mrb[0].mxu0
    %v585 = vpop.f32.mrb[0].mxu0
    %586 = vdwg.mxu0
    %v589 = vunpack.c.l.b16 %v533
    %v590 = vunpack.c.l.b16 %v534
    %v591 = vpack.c.b16 %v590, %v589
    %593 = vmatprep.subr.bf16.mxu0 0
    %594 = vmatpush1.bf16.msra.mxu0 %v591
    %595 = vmatprep.subr.bf16.mxu0 0
    %596 = vmatpush1.bf16.msra.mxu0 0
    %597 = vmatprep.subr.bf16.mxu0 0
    %598 = vmatpush1.bf16.msra.mxu0 0
    %599 = vmatprep.subr.bf16.mxu0 0
    %600 = vmatpush1.bf16.msra.mxu0 0
    %601 = vmatprep.subr.bf16.mxu0 0
    %602 = vmatpush1.bf16.msra.mxu0 0
    %603 = vmatprep.subr.bf16.mxu0 0
    %604 = vmatpush1.bf16.msra.mxu0 0
    %605 = vmatprep.subr.bf16.mxu0 0
    %606 = vmatpush1.bf16.msra.mxu0 0
    %607 = vmatprep.subr.bf16.mxu0 0
    %608 = vmatpush1.bf16.msra.mxu0 0
    %609 = vmatprep.subr.bf16.mxu0 0
    %610 = vmatpush1.bf16.msra.mxu0 0
    %611 = vmatprep.subr.bf16.mxu0 0
    %612 = vmatpush1.bf16.msra.mxu0 0
    %613 = vmatprep.subr.bf16.mxu0 0
    %614 = vmatpush1.bf16.msra.mxu0 0
    %615 = vmatprep.subr.bf16.mxu0 0
    %616 = vmatpush1.bf16.msra.mxu0 0
    %617 = vmatprep.subr.bf16.mxu0 0
    %618 = vmatpush1.bf16.msra.mxu0 0
    %619 = vmatprep.subr.bf16.mxu0 0
    %620 = vmatpush1.bf16.msra.mxu0 0
    %621 = vmatprep.subr.bf16.mxu0 0
    %622 = vmatpush1.bf16.msra.mxu0 0
    %623 = vmatprep.subr.bf16.mxu0 0
    %624 = vmatpush1.bf16.msra.mxu0 0
    %625 = vmatprep.mubr.bf16.mxu0 0
    %626 = vmatmul.mubr.bf16.gmra.mrb[0].mxu0 %v271
    %v627 = vpop.f32.mrb[0].mxu0
    %v628 = vadd.f32 %v582, %v627
    %v629 = vpop.f32.mrb[0].mxu0
    %v630 = vpop.f32.mrb[0].mxu0
    %v631 = vpop.f32.mrb[0].mxu0
    %632 = vdwg.mxu0
    %v633 = vld [vmem:[#allocation17] sm:$0x1]
    %v635 = vlaneseq
    %v636 = vshrl.u32 %v635, 7
    %v637 = vsub.s32 0, %v636
    %v638 = vrot.slane %v633, %v637
    %v640 = vadd.f32 %v628, %v638
    %v641 = vmax.f32 %v640, 0.0
    %v642 = vpack.c.bf16 %v641, %v641
    %v643 = vld [vmem:[%s10] sm:$0xf]
    %v644 = vld [vmem:[%s10 + $0x4] sm:$0xf]
    %v645 = vld [vmem:[%s10 + $0x8] sm:$0xf]
    %v646 = vld [vmem:[%s10 + $0xc] sm:$0xf]
    %v647 = vld [vmem:[#allocation19] sm:$0x1]
    %v649 = vlaneseq
    %v650 = vshrl.u32 %v649, 7
    %v651 = vsub.s32 0, %v650
    %v652 = vrot.slane %v647, %v651
    %v658 = vunpack.c.l.b16 %v643
    %v659 = vunpack.c.l.b16 %v644
    %v660 = vunpack.c.l.b16 %v645
    %v661 = vunpack.c.l.b16 %v646
    %v662 = vpack.c.b16 %v659, %v658
    %v663 = vpack.c.b16 %v661, %v660
    %vm666 = vcmask 261120
    %v668 = vsel %vm666, %v642, 0
    %670 = vmatprep.subr.bf16.mxu0 0
    %671 = vmatpush1.bf16.msra.mxu0 %v662
    %672 = vmatprep.subr.bf16.mxu0 0
    %673 = vmatpush1.bf16.msra.mxu0 %v663
    %674 = vmatprep.subr.bf16.mxu0 0
    %675 = vmatpush1.bf16.msra.mxu0 0
    %676 = vmatprep.subr.bf16.mxu0 0
    %677 = vmatpush1.bf16.msra.mxu0 0
    %678 = vmatprep.subr.bf16.mxu0 0
    %679 = vmatpush1.bf16.msra.mxu0 0
    %680 = vmatprep.subr.bf16.mxu0 0
    %681 = vmatpush1.bf16.msra.mxu0 0
    %682 = vmatprep.subr.bf16.mxu0 0
    %683 = vmatpush1.bf16.msra.mxu0 0
    %684 = vmatprep.subr.bf16.mxu0 0
    %685 = vmatpush1.bf16.msra.mxu0 0
    %686 = vmatprep.subr.bf16.mxu0 0
    %687 = vmatpush1.bf16.msra.mxu0 0
    %688 = vmatprep.subr.bf16.mxu0 0
    %689 = vmatpush1.bf16.msra.mxu0 0
    %690 = vmatprep.subr.bf16.mxu0 0
    %691 = vmatpush1.bf16.msra.mxu0 0
    %692 = vmatprep.subr.bf16.mxu0 0
    %693 = vmatpush1.bf16.msra.mxu0 0
    %694 = vmatprep.subr.bf16.mxu0 0
    %695 = vmatpush1.bf16.msra.mxu0 0
    %696 = vmatprep.subr.bf16.mxu0 0
    %697 = vmatpush1.bf16.msra.mxu0 0
    %698 = vmatprep.subr.bf16.mxu0 0
    %699 = vmatpush1.bf16.msra.mxu0 0
    %700 = vmatprep.subr.bf16.mxu0 0
    %701 = vmatpush1.bf16.msra.mxu0 0
    %702 = vmatprep.mubr.bf16.mxu0 0
    %703 = vmatmul.mubr.bf16.gmra.mrb[0].mxu0 %v668
    %v704 = vpop.f32.mrb[0].mxu0
    %v705 = vadd.f32 %v652, %v704
    %v706 = vpop.f32.mrb[0].mxu0
    %v707 = vpop.f32.mrb[0].mxu0
    %v708 = vpop.f32.mrb[0].mxu0
    %709 = vdwg.mxu0
    %v710 = vmax.f32 %v705, 0.0
    %v711 = vpack.c.bf16 %v710, %v710
    %v712 = vld [vmem:[%s12] sm:$0xf]
    %v713 = vld [vmem:[%s12 + $0x4] sm:$0xf]
    %v714 = vld [vmem:[%s12 + $0x8] sm:$0xf]
    %v715 = vld [vmem:[%s12 + $0xc] sm:$0xf]
    %v716 = vld [vmem:[#allocation20] sm:$0x1]
    %v718 = vlaneseq
    %v719 = vshrl.u32 %v718, 7
    %v720 = vsub.s32 0, %v719
    %v721 = vrot.slane %v716, %v720
    %v727 = vunpack.c.l.b16 %v712
    %v728 = vunpack.c.l.b16 %v713
    %v729 = vunpack.c.l.b16 %v714
    %v730 = vunpack.c.l.b16 %v715
    %v731 = vpack.c.b16 %v728, %v727
    %v732 = vpack.c.b16 %v730, %v729
    %v736 = vsel %vm666, %v711, 0
    %738 = vmatprep.subr.bf16.mxu0 0
    %739 = vmatpush1.bf16.msra.mxu0 %v731
    %740 = vmatprep.subr.bf16.mxu0 0
    %741 = vmatpush1.bf16.msra.mxu0 %v732
    %742 = vmatprep.subr.bf16.mxu0 0
    %743 = vmatpush1.bf16.msra.mxu0 0
    %744 = vmatprep.subr.bf16.mxu0 0
    %745 = vmatpush1.bf16.msra.mxu0 0
    %746 = vmatprep.subr.bf16.mxu0 0
    %747 = vmatpush1.bf16.msra.mxu0 0
    %748 = vmatprep.subr.bf16.mxu0 0
    %749 = vmatpush1.bf16.msra.mxu0 0
    %750 = vmatprep.subr.bf16.mxu0 0
    %751 = vmatpush1.bf16.msra.mxu0 0
    %752 = vmatprep.subr.bf16.mxu0 0
    %753 = vmatpush1.bf16.msra.mxu0 0
    %754 = vmatprep.subr.bf16.mxu0 0
    %755 = vmatpush1.bf16.msra.mxu0 0
    %756 = vmatprep.subr.bf16.mxu0 0
    %757 = vmatpush1.bf16.msra.mxu0 0
    %758 = vmatprep.subr.bf16.mxu0 0
    %759 = vmatpush1.bf16.msra.mxu0 0
    %760 = vmatprep.subr.bf16.mxu0 0
    %761 = vmatpush1.bf16.msra.mxu0 0
    %762 = vmatprep.subr.bf16.mxu0 0
    %763 = vmatpush1.bf16.msra.mxu0 0
    %764 = vmatprep.subr.bf16.mxu0 0
    %765 = vmatpush1.bf16.msra.mxu0 0
    %766 = vmatprep.subr.bf16.mxu0 0
    %767 = vmatpush1.bf16.msra.mxu0 0
    %768 = vmatprep.subr.bf16.mxu0 0
    %769 = vmatpush1.bf16.msra.mxu0 0
    %770 = vmatprep.mubr.bf16.mxu0 0
    %771 = vmatmul.mubr.bf16.gmra.mrb[0].mxu0 %v736
    %v772 = vpop.f32.mrb[0].mxu0
    %v773 = vadd.f32 %v721, %v772
    %v774 = vpop.f32.mrb[0].mxu0
    %v775 = vpop.f32.mrb[0].mxu0
    %v776 = vpop.f32.mrb[0].mxu0
    %777 = vdwg.mxu0
    %v778 = vmax.f32 %v773, 0.0
    %v779 = vpack.c.bf16 %v778, %v778
    %v780 = vld [vmem:[%s14] sm:$0xf]
    %v781 = vld [vmem:[%s14 + $0x4] sm:$0xf]
    %v782 = vld [vmem:[%s14 + $0x8] sm:$0xf]
    %v783 = vld [vmem:[%s14 + $0xc] sm:$0xf]
    %v784 = vld [vmem:[#allocation22] sm:$0x1]
    %v786 = vlaneseq
    %v787 = vshrl.u32 %v786, 7
    %v788 = vsub.s32 0, %v787
    %v789 = vrot.slane %v784, %v788
    %v795 = vunpack.c.l.b16 %v780
    %v796 = vunpack.c.l.b16 %v781
    %v797 = vunpack.c.l.b16 %v782
    %v798 = vunpack.c.l.b16 %v783
    %v799 = vpack.c.b16 %v796, %v795
    %v800 = vpack.c.b16 %v798, %v797
    %v804 = vsel %vm666, %v779, 0
    %806 = vmatprep.subr.bf16.mxu0 0
    %807 = vmatpush1.bf16.msra.mxu0 %v799
    %808 = vmatprep.subr.bf16.mxu0 0
    %809 = vmatpush1.bf16.msra.mxu0 %v800
    %810 = vmatprep.subr.bf16.mxu0 0
    %811 = vmatpush1.bf16.msra.mxu0 0
    %812 = vmatprep.subr.bf16.mxu0 0
    %813 = vmatpush1.bf16.msra.mxu0 0
    %814 = vmatprep.subr.bf16.mxu0 0
    %815 = vmatpush1.bf16.msra.mxu0 0
    %816 = vmatprep.subr.bf16.mxu0 0
    %817 = vmatpush1.bf16.msra.mxu0 0
    %818 = vmatprep.subr.bf16.mxu0 0
    %819 = vmatpush1.bf16.msra.mxu0 0
    %820 = vmatprep.subr.bf16.mxu0 0
    %821 = vmatpush1.bf16.msra.mxu0 0
    %822 = vmatprep.subr.bf16.mxu0 0
    %823 = vmatpush1.bf16.msra.mxu0 0
    %824 = vmatprep.subr.bf16.mxu0 0
    %825 = vmatpush1.bf16.msra.mxu0 0
    %826 = vmatprep.subr.bf16.mxu0 0
    %827 = vmatpush1.bf16.msra.mxu0 0
    %828 = vmatprep.subr.bf16.mxu0 0
    %829 = vmatpush1.bf16.msra.mxu0 0
    %830 = vmatprep.subr.bf16.mxu0 0
    %831 = vmatpush1.bf16.msra.mxu0 0
    %832 = vmatprep.subr.bf16.mxu0 0
    %833 = vmatpush1.bf16.msra.mxu0 0
    %834 = vmatprep.subr.bf16.mxu0 0
    %835 = vmatpush1.bf16.msra.mxu0 0
    %836 = vmatprep.subr.bf16.mxu0 0
    %837 = vmatpush1.bf16.msra.mxu0 0
    %838 = vmatprep.mubr.bf16.mxu0 0
    %839 = vmatmul.mubr.bf16.gmra.mrb[0].mxu0 %v804
    %v840 = vpop.f32.mrb[0].mxu0
    %v841 = vadd.f32 %v789, %v840
    %v842 = vpop.f32.mrb[0].mxu0
    %v843 = vpop.f32.mrb[0].mxu0
    %v844 = vpop.f32.mrb[0].mxu0
    %845 = vdwg.mxu0
    %v846 = vmax.f32 %v841, 0.0
    %v847 = vpack.c.bf16 %v846, %v846
    %v848 = vld [vmem:[#allocation23] sm:$0xf]
    %v849 = vld [vmem:[#allocation23 + $0x4] sm:$0xf]
    %v850 = vld [vmem:[#allocation23 + $0x8] sm:$0xf]
    %v851 = vld [vmem:[#allocation23 + $0xc] sm:$0xf]
    %v852 = vld [vmem:[#allocation25] sm:$0x1]
    %v854 = vlaneseq
    %v855 = vshrl.u32 %v854, 7
    %v856 = vsub.s32 0, %v855
    %v857 = vrot.slane %v852, %v856
    %v863 = vunpack.c.l.b16 %v848
    %v864 = vunpack.c.l.b16 %v849
    %v865 = vunpack.c.l.b16 %v850
    %v866 = vunpack.c.l.b16 %v851
    %v867 = vpack.c.b16 %v864, %v863
    %v868 = vpack.c.b16 %v866, %v865
    %v872 = vsel %vm666, %v847, 0
    %874 = vmatprep.subr.bf16.mxu0 0
    %875 = vmatpush1.bf16.msra.mxu0 %v867
    %876 = vmatprep.subr.bf16.mxu0 0
    %877 = vmatpush1.bf16.msra.mxu0 %v868
    %878 = vmatprep.subr.bf16.mxu0 0
    %879 = vmatpush1.bf16.msra.mxu0 0
    %880 = vmatprep.subr.bf16.mxu0 0
    %881 = vmatpush1.bf16.msra.mxu0 0
    %882 = vmatprep.subr.bf16.mxu0 0
    %883 = vmatpush1.bf16.msra.mxu0 0
    %884 = vmatprep.subr.bf16.mxu0 0
    %885 = vmatpush1.bf16.msra.mxu0 0
    %886 = vmatprep.subr.bf16.mxu0 0
    %887 = vmatpush1.bf16.msra.mxu0 0
    %888 = vmatprep.subr.bf16.mxu0 0
    %889 = vmatpush1.bf16.msra.mxu0 0
    %890 = vmatprep.subr.bf16.mxu0 0
    %891 = vmatpush1.bf16.msra.mxu0 0
    %892 = vmatprep.subr.bf16.mxu0 0
    %893 = vmatpush1.bf16.msra.mxu0 0
    %894 = vmatprep.subr.bf16.mxu0 0
    %895 = vmatpush1.bf16.msra.mxu0 0
    %896 = vmatprep.subr.bf16.mxu0 0
    %897 = vmatpush1.bf16.msra.mxu0 0
    %898 = vmatprep.subr.bf16.mxu0 0
    %899 = vmatpush1.bf16.msra.mxu0 0
    %900 = vmatprep.subr.bf16.mxu0 0
    %901 = vmatpush1.bf16.msra.mxu0 0
    %902 = vmatprep.subr.bf16.mxu0 0
    %903 = vmatpush1.bf16.msra.mxu0 0
    %904 = vmatprep.subr.bf16.mxu0 0
    %905 = vmatpush1.bf16.msra.mxu0 0
    %906 = vmatprep.mubr.bf16.mxu0 0
    %907 = vmatmul.mubr.bf16.gmra.mrb[0].mxu0 %v872
    %v908 = vpop.f32.mrb[0].mxu0
    %v909 = vadd.f32 %v857, %v908
    %v910 = vpop.f32.mrb[0].mxu0
    %v911 = vpop.f32.mrb[0].mxu0
    %v912 = vpop.f32.mrb[0].mxu0
    %913 = vdwg.mxu0
    %v914 = vmax.f32 %v909, 0.0
    %v915 = vpack.c.bf16 %v914, %v914
    %v916 = vld [vmem:[%s18] sm:$0xf]
    %v917 = vld [vmem:[%s18 + $0x4] sm:$0xf]
    %v918 = vld [vmem:[%s18 + $0x8] sm:$0xf]
    %v919 = vld [vmem:[%s18 + $0xc] sm:$0xf]
    %v920 = vld [vmem:[%s19] sm:$0x1]
    %v922 = vlaneseq
    %v923 = vshrl.u32 %v922, 7
    %v924 = vsub.s32 0, %v923
    %v925 = vrot.slane %v920, %v924
    %v931 = vunpack.c.l.b16 %v916
    %v932 = vunpack.c.l.b16 %v917
    %v933 = vunpack.c.l.b16 %v918
    %v934 = vunpack.c.l.b16 %v919
    %v935 = vpack.c.b16 %v932, %v931
    %v936 = vpack.c.b16 %v934, %v933
    %v940 = vsel %vm666, %v915, 0
    %942 = vmatprep.subr.bf16.mxu0 0
    %943 = vmatpush1.bf16.msra.mxu0 %v935
    %944 = vmatprep.subr.bf16.mxu0 0
    %945 = vmatpush1.bf16.msra.mxu0 %v936
    %946 = vmatprep.subr.bf16.mxu0 0
    %947 = vmatpush1.bf16.msra.mxu0 0
    %948 = vmatprep.subr.bf16.mxu0 0
    %949 = vmatpush1.bf16.msra.mxu0 0
    %950 = vmatprep.subr.bf16.mxu0 0
    %951 = vmatpush1.bf16.msra.mxu0 0
    %952 = vmatprep.subr.bf16.mxu0 0
    %953 = vmatpush1.bf16.msra.mxu0 0
    %954 = vmatprep.subr.bf16.mxu0 0
    %955 = vmatpush1.bf16.msra.mxu0 0
    %956 = vmatprep.subr.bf16.mxu0 0
    %957 = vmatpush1.bf16.msra.mxu0 0
    %958 = vmatprep.subr.bf16.mxu0 0
    %959 = vmatpush1.bf16.msra.mxu0 0
    %960 = vmatprep.subr.bf16.mxu0 0
    %961 = vmatpush1.bf16.msra.mxu0 0
    %962 = vmatprep.subr.bf16.mxu0 0
    %963 = vmatpush1.bf16.msra.mxu0 0
    %964 = vmatprep.subr.bf16.mxu0 0
    %965 = vmatpush1.bf16.msra.mxu0 0
    %966 = vmatprep.subr.bf16.mxu0 0
    %967 = vmatpush1.bf16.msra.mxu0 0
    %968 = vmatprep.subr.bf16.mxu0 0
    %969 = vmatpush1.bf16.msra.mxu0 0
    %970 = vmatprep.subr.bf16.mxu0 0
    %971 = vmatpush1.bf16.msra.mxu0 0
    %972 = vmatprep.subr.bf16.mxu0 0
    %973 = vmatpush1.bf16.msra.mxu0 0
    %974 = vmatprep.mubr.bf16.mxu0 0
    %975 = vmatmul.mubr.bf16.gmra.mrb[0].mxu0 %v940
    %v976 = vpop.f32.mrb[0].mxu0
    %v977 = vadd.f32 %v925, %v976
    %v978 = vpop.f32.mrb[0].mxu0
    %v979 = vpop.f32.mrb[0].mxu0
    %v980 = vpop.f32.mrb[0].mxu0
    %981 = vdwg.mxu0
    %v982 = vmax.f32 %v977, 0.0
    %983 = vst [vmem:[#allocation26] sm:$0xff] %v982
    // Predicated region
    $region142: #{tpu_custom_call.1} parent=1 // pred_check
      _
    $region143: #{tpu_custom_call.1} parent=1 // pred_check_branch
      %985 = sbr.rel (0) target = $region145
    $region144: #{tpu_custom_call.1} parent=1 // pred_region
      %s987 = ssub.s32 128, 128
      %988 = vsyncadd [#allocation4], %s987
      %s990 = sshll.u32 [#allocation26], 4
      %s991 = int_to_ptr.vmem [resolvable:$true] %s990
      %993 = dma.vmem_to_hbm [thread:$0]  %s991, 128, %s20, [#allocation4]
    $region145: #{tpu_custom_call.1} parent=1 // pred_fallthru
      _
    // Predicated region
    $region146: #{tpu_custom_call.1} parent=1 // pred_check
      _
    $region147: #{tpu_custom_call.1} parent=1 // pred_check_branch
      %995 = sbr.rel (0) target = $region149
    $region148: #{tpu_custom_call.1} parent=1 // pred_region
      %996 = dma.done [#allocation4], 128
    $region149: #{tpu_custom_call.1} parent=1 // pred_fallthru
      _
    %997 = vsyncpa [#allocation3], 1
    %998 = vsyncpa [#allocation6], 1
    %999 = vsyncpa [#allocation9], 1
    %1000 = vsyncpa [#allocation12], 1
    %1001 = vsyncpa [#allocation15], 1
    %1002 = vsyncpa [#allocation18], 1
    %1003 = vsyncpa [#allocation21], 1
    %1004 = vsyncpa [#allocation24], 1
    %1005 = vsyncpa [#allocation4], 1

</llo_original>
